<compile_context>
chip_gen: v6e
topology: v6e:2x2x1
jax: 0.10.0
libtpu: 0.0.40
codegen_flags: <defaults>
</compile_context>

<pallas_src>
import functools

import jax
import jax.numpy as jnp
import numpy as np
from jax.experimental import pallas as pl
from jax.experimental.pallas import tpu as pltpu


def _fft_l1_kernel(x1_ref, x2_ref, l_ref, r_ref, out_ref, *, H, R, KW):
    # x1_ref/x2_ref : (1, R*H, K*W) f32   -- R x K images packed row/lane-wise
    # l_ref         : (R*2H, R*H)  bf16   -- kron(I_R, [C_H; S_H])
    # r_ref         : (K*W, 2*K*W) bf16   -- [kron(I_K, C_W) | kron(I_K, S_W)]
    # out_ref       : (1, K*W)     f32    -- per-lane partial sums for this step
    d = (x1_ref[0] - x2_ref[0]).astype(l_ref.dtype)                  # (RH, KW)

    # left transform: rows r*2H+[0,H) = C_H @ d_r ; rows r*2H+[H,2H) = S_H @ d_r
    t1 = jnp.dot(l_ref[...], d, preferred_element_type=jnp.float32)  # (2RH, KW)
    # right transform: cols [0,KW) = (.)@C_W per image, cols [KW,2KW) = (.)@S_W
    t2 = jnp.dot(t1.astype(r_ref.dtype), r_ref[...],
                 preferred_element_type=jnp.float32)                 # (2RH, 2KW)

    cw_half = t2[:, :KW].reshape(R, 2 * H, KW)   # [:, :H] = ChdCw, [:, H:] = ShdCw
    sw_half = t2[:, KW:].reshape(R, 2 * H, KW)   # [:, :H] = ChdSw, [:, H:] = ShdSw

    re = cw_half[:, :H, :] - sw_half[:, H:, :]          # Re(F) = A - E
    im_neg = sw_half[:, :H, :] + cw_half[:, H:, :]      # -Im(F); |.| is the same

    combined = jnp.abs(re) + jnp.abs(im_neg)            # (R, H, KW)
    # reduce over batch + sublane axes only; cross-lane reduce happens in JAX
    out_ref[...] = jnp.sum(combined, axis=(0, 1)).reshape(1, KW)


def _dft_matrices(n):
    idx = jnp.arange(n, dtype=jnp.float32)
    ang = 2.0 * jnp.pi * jnp.outer(idx, idx) / float(n)
    return jnp.cos(ang), jnp.sin(ang)


def fft_l1_loss(img1, img2):
    """Pallas implementation of the FFT L1 loss. img1, img2: (B, C, H, W) f32."""
    B, C, H, W = img1.shape
    N = B * C

    # packing factors: K images along lanes, R images along sublanes.
    K = max(1, 128 // W) if W < 128 else 1
    R_cap = max(1, 128 // (2 * H)) if (2 * H) < 128 else 1
    R = max(1, min(R_cap, -(-N // K)))          # don't over-pad tiny batches
    P = R * K
    G = -(-N // P)
    pad = G * P - N

    x1 = img1.reshape(N, H, W).astype(jnp.float32)
    x2 = img2.reshape(N, H, W).astype(jnp.float32)
    if pad:
        z = jnp.zeros((pad, H, W), jnp.float32)  # zero diff => zero contribution
        x1 = jnp.concatenate([x1, z], axis=0)
        x2 = jnp.concatenate([x2, z], axis=0)

    def pack(x):
        # (G*R*K, H, W) -> (G, R*H, K*W): image (r, k) occupies row block r,
        # lane block k of the packed slab.
        x = x.reshape(G, R, K, H, W).transpose(0, 1, 3, 2, 4)
        return x.reshape(G, R * H, K * W)

    x1p, x2p = pack(x1), pack(x2)

    ch, sh = _dft_matrices(H)
    cw, sw = _dft_matrices(W)
    chs = jnp.concatenate([ch, sh], axis=0)                         # (2H, H)
    L = jnp.kron(jnp.eye(R, dtype=jnp.float32), chs)                # (R*2H, R*H)
    Rm = jnp.concatenate(
        [jnp.kron(jnp.eye(K, dtype=jnp.float32), cw),
         jnp.kron(jnp.eye(K, dtype=jnp.float32), sw)], axis=1)      # (KW, 2KW)
    L = L.astype(jnp.bfloat16)
    Rm = Rm.astype(jnp.bfloat16)

    RH = R * H
    KW = K * W
    inv_total = 1.0 / float(B * C * H * W * 2)

    kernel = functools.partial(_fft_l1_kernel, H=H, R=R, KW=KW)

    flops = int(G * (2 * (2 * RH) * RH * KW + 2 * (2 * RH) * KW * (2 * KW)))
    bytes_accessed = int(2 * G * RH * KW * 4            # inputs
                         + (2 * RH * RH + KW * 2 * KW) * 2   # bf16 DFT matrices
                         + G * KW * 4)                   # partial-sum output

    partials = pl.pallas_call(
        kernel,
        out_shape=jax.ShapeDtypeStruct((G, KW), jnp.float32),
        grid_spec=pltpu.PrefetchScalarGridSpec(
            num_scalar_prefetch=0,
            grid=(G,),
            in_specs=[
                pl.BlockSpec((1, RH, KW), lambda i: (i, 0, 0)),   # x1 pack
                pl.BlockSpec((1, RH, KW), lambda i: (i, 0, 0)),   # x2 pack
                pl.BlockSpec((2 * RH, RH), lambda i: (0, 0)),     # fused row DFT
                pl.BlockSpec((KW, 2 * KW), lambda i: (0, 0)),     # fused col DFT
            ],
            out_specs=pl.BlockSpec((1, KW), lambda i: (i, 0)),
        ),
        compiler_params=pltpu.CompilerParams(
            dimension_semantics=("parallel",),
            vmem_limit_bytes=32 * 1024 * 1024,
        ),
        cost_estimate=pl.CostEstimate(
            flops=flops, transcendentals=0, bytes_accessed=bytes_accessed),
    )(x1p, x2p, L, Rm)

    return jnp.sum(partials) * inv_total


def _reference_loss(img1, img2):
    """Pure-JAX reference matching the PyTorch module."""
    f1 = jnp.fft.fft2(img1.astype(jnp.complex64), axes=(-2, -1))
    f2 = jnp.fft.fft2(img2.astype(jnp.complex64), axes=(-2, -1))
    d = f1 - f2
    stacked = jnp.stack([jnp.real(d), jnp.imag(d)], axis=-1)
    return jnp.mean(jnp.abs(stacked))


if __name__ == "__main__":
    key = jax.random.PRNGKey(0)
    k1, k2 = jax.random.split(key)

    # shape from the spec: (B, C, H, W) = (2, 4, 16, 16)
    B, C, H, W = 2, 4, 16, 16
    img1 = jax.random.uniform(k1, (B, C, H, W), dtype=jnp.float32)
    img2 = jax.random.uniform(k2, (B, C, H, W), dtype=jnp.float32)
    loss = jax.block_until_ready(fft_l1_loss(img1, img2))
    ref = jax.block_until_ready(_reference_loss(img1, img2))
    np.testing.assert_allclose(np.asarray(loss), np.asarray(ref),
                               rtol=2e-2, atol=1e-3)

    # second shape exercising multi-image packing (R=4) and a multi-step grid
    B2, C2 = 4, 16   # N = 64 -> K=8, R=4, G=2
    i1 = jax.random.uniform(jax.random.PRNGKey(1), (B2, C2, H, W), dtype=jnp.float32)
    i2 = jax.random.uniform(jax.random.PRNGKey(2), (B2, C2, H, W), dtype=jnp.float32)
    loss2 = jax.block_until_ready(fft_l1_loss(i1, i2))
    ref2 = jax.block_until_ready(_reference_loss(i1, i2))
    np.testing.assert_allclose(np.asarray(loss2), np.asarray(ref2),
                               rtol=2e-2, atol=1e-3)

    print("KERNEL_OK")
</pallas_src>

<mosaic_0001>
module attributes {stable_mosaic.version = 11 : i64} {
  func.func @_fft_l1_kernel(%arg0: i32, %arg1: memref<1x16x128xf32, #tpu.memory_space<vmem>>, %arg2: memref<1x16x128xf32, #tpu.memory_space<vmem>>, %arg3: memref<32x16xbf16, #tpu.memory_space<vmem>>, %arg4: memref<128x256xbf16, #tpu.memory_space<vmem>>, %arg5: memref<1x128xf32, #tpu.memory_space<vmem>>) attributes {dimension_semantics = [#tpu.dimension_semantics<parallel>], iteration_bounds = array<i64: 1>, scalar_prefetch = 0 : i64, scratch_operands = 0 : i64, tpu.core_type = #tpu.core_type<tc>, window_params = [{transform_indices = @transform_0, window_bounds = array<i64: 1, 16, 128>}, {transform_indices = @transform_1, window_bounds = array<i64: 1, 16, 128>}, {pipeline_mode = #tpu.pipeline_mode<synchronous>, transform_indices = @transform_2, window_bounds = array<i64: 32, 16>}, {pipeline_mode = #tpu.pipeline_mode<synchronous>, transform_indices = @transform_3, window_bounds = array<i64: 128, 256>}, {transform_indices = @transform_4, window_bounds = array<i64: 1, 128>}]} {
    %c0 = arith.constant 0 : index
    %c0_0 = arith.constant 0 : index
    %c0_1 = arith.constant 0 : index
    %0 = vector.load %arg1[%c0, %c0_0, %c0_1] : memref<1x16x128xf32, #tpu.memory_space<vmem>>, vector<1x16x128xf32>
    %1 = vector.shape_cast %0 : vector<1x16x128xf32> to vector<16x128xf32>
    %c0_2 = arith.constant 0 : index
    %c0_3 = arith.constant 0 : index
    %c0_4 = arith.constant 0 : index
    %2 = vector.load %arg2[%c0_2, %c0_3, %c0_4] : memref<1x16x128xf32, #tpu.memory_space<vmem>>, vector<1x16x128xf32>
    %3 = vector.shape_cast %2 : vector<1x16x128xf32> to vector<16x128xf32>
    %4 = arith.subf %1, %3 : vector<16x128xf32>
    %5 = arith.truncf %4 : vector<16x128xf32> to vector<16x128xbf16>
    %c0_5 = arith.constant 0 : index
    %c0_6 = arith.constant 0 : index
    %6 = vector.load %arg3[%c0_5, %c0_6] : memref<32x16xbf16, #tpu.memory_space<vmem>>, vector<32x16xbf16>
    %cst = arith.constant dense<0.000000e+00> : vector<32x128xf32>
    %7 = tpu.matmul %6, %5, %cst {dimension_numbers = #tpu.dot_dimension_numbers<[1], [0], [0], [1], [0, 0, 1, 1], [], []>} : vector<32x16xbf16>, vector<16x128xbf16>, vector<32x128xf32> -> vector<32x128xf32>
    %8 = arith.truncf %7 : vector<32x128xf32> to vector<32x128xbf16>
    %c0_7 = arith.constant 0 : index
    %c0_8 = arith.constant 0 : index
    %9 = vector.load %arg4[%c0_7, %c0_8] : memref<128x256xbf16, #tpu.memory_space<vmem>>, vector<128x256xbf16>
    %cst_9 = arith.constant dense<0.000000e+00> : vector<32x256xf32>
    %10 = tpu.matmul %8, %9, %cst_9 {dimension_numbers = #tpu.dot_dimension_numbers<[1], [0], [0], [1], [0, 0, 1, 1], [], []>} : vector<32x128xbf16>, vector<128x256xbf16>, vector<32x256xf32> -> vector<32x256xf32>
    %11 = vector.extract_strided_slice %10 {offsets = [0, 0], sizes = [32, 128], strides = [1, 1]} : vector<32x256xf32> to vector<32x128xf32>
    %12 = vector.shape_cast %11 : vector<32x128xf32> to vector<1x32x128xf32>
    %13 = vector.extract_strided_slice %10 {offsets = [0, 128], sizes = [32, 128], strides = [1, 1]} : vector<32x256xf32> to vector<32x128xf32>
    %14 = vector.shape_cast %13 : vector<32x128xf32> to vector<1x32x128xf32>
    %15 = vector.extract_strided_slice %12 {offsets = [0, 0, 0], sizes = [1, 16, 128], strides = [1, 1, 1]} : vector<1x32x128xf32> to vector<1x16x128xf32>
    %16 = vector.extract_strided_slice %14 {offsets = [0, 16, 0], sizes = [1, 16, 128], strides = [1, 1, 1]} : vector<1x32x128xf32> to vector<1x16x128xf32>
    %17 = arith.subf %15, %16 : vector<1x16x128xf32>
    %18 = vector.extract_strided_slice %14 {offsets = [0, 0, 0], sizes = [1, 16, 128], strides = [1, 1, 1]} : vector<1x32x128xf32> to vector<1x16x128xf32>
    %19 = vector.extract_strided_slice %12 {offsets = [0, 16, 0], sizes = [1, 16, 128], strides = [1, 1, 1]} : vector<1x32x128xf32> to vector<1x16x128xf32>
    %20 = arith.addf %18, %19 : vector<1x16x128xf32>
    %21 = math.absf %17 : vector<1x16x128xf32>
    %22 = math.absf %20 : vector<1x16x128xf32>
    %23 = arith.addf %21, %22 : vector<1x16x128xf32>
    %cst_10 = arith.constant dense<0.000000e+00> : vector<128xf32>
    %24 = vector.multi_reduction <add>, %23, %cst_10 [0, 1] : vector<1x16x128xf32> to vector<128xf32>
    %25 = vector.shape_cast %24 : vector<128xf32> to vector<1x128xf32>
    %c0_11 = arith.constant 0 : index
    %c0_12 = arith.constant 0 : index
    %26 = vector.load %arg5[%c0_11, %c0_12] : memref<1x128xf32, #tpu.memory_space<vmem>>, vector<1x128xf32>
    tpu.vector_store %arg5[%c0_11, %c0_12], %25 {strides = array<i32>} : memref<1x128xf32, #tpu.memory_space<vmem>>, vector<1x128xf32>,
    return
  }
  func.func @transform_0(%arg0: i32) -> (i32, i32, i32) {
    %c0_i32 = arith.constant 0 : i32
    %c0_i32_0 = arith.constant 0 : i32
    %c0_i32_1 = arith.constant 0 : i32
    return %arg0, %c0_i32, %c0_i32_0 : i32, i32, i32
  }
  func.func @transform_1(%arg0: i32) -> (i32, i32, i32) {
    %c0_i32 = arith.constant 0 : i32
    %c0_i32_0 = arith.constant 0 : i32
    %c0_i32_1 = arith.constant 0 : i32
    return %arg0, %c0_i32, %c0_i32_0 : i32, i32, i32
  }
  func.func @transform_2(%arg0: i32) -> (i32, i32) {
    %c0_i32 = arith.constant 0 : i32
    %c0_i32_0 = arith.constant 0 : i32
    %c0_i32_1 = arith.constant 0 : i32
    return %c0_i32, %c0_i32_0 : i32, i32
  }
  func.func @transform_3(%arg0: i32) -> (i32, i32) {
    %c0_i32 = arith.constant 0 : i32
    %c0_i32_0 = arith.constant 0 : i32
    %c0_i32_1 = arith.constant 0 : i32
    return %c0_i32, %c0_i32_0 : i32, i32
  }
  func.func @transform_4(%arg0: i32) -> (i32, i32) {
    %c0_i32 = arith.constant 0 : i32
    %c0_i32_0 = arith.constant 0 : i32
    return %arg0, %c0_i32 : i32, i32
  }
}

</mosaic_0001>

<llo_original>
// kernel: tpu_custom_call.1
$region0: #{tpu_custom_call.1}
  #allocation0 [shape = 'u32[]', space=smem, size = 0x4, offset = 0x4, fixed_abs, tag = 'smem constant byte address 0x4 - core index']
  #allocation1 [shape = 'u32[144,128]{1,0:T(1,128)}', space=vmem, size = 0x12000, scoped, tag = 'internal scratch']
  %s0 = inlined_call_operand.vmem [shape: f32[1,16,128], index: 0, kind: input, shape index: {}]
  %s1 = inlined_call_operand.hbm [shape: f32[1,16,128], index: 1, kind: input, shape index: {}]
  %s2 = inlined_call_operand.vmem [shape: bf16[32,16], index: 2, kind: input, shape index: {}]
  %s3 = inlined_call_operand.hbm [shape: bf16[128,256], index: 3, kind: input, shape index: {}]
  %s4 = inlined_call_operand.hbm [shape: f32[1,128], index: 4, kind: output, shape index: {}]
  %s5 = sld [smem:[#allocation0]]
  $region34: #{tpu_custom_call.1} parent=0
    _
  %s7 = ssub.s32 1, %s5
  %s8 = scalar_select 0, %s7, %s5
  $region1: #{tpu_custom_call.1} parent=0
    #allocation2 [shape = 'u8[8192]{0}', space=vmem, size = 0x2000, scoped, tag = 'input window, operand 1, single buffered']
    #allocation3 [shape = 's32[1]{0}', space=sflag, size = 0x4, scoped, tag = 'scoped memory for tpu_custom_call.1']
    #allocation4 [shape = 's32[1]{0}', space=sflag, size = 0x4, scoped, tag = 'scoped memory for tpu_custom_call.1']
    #allocation5 [shape = 'u8[65536]{0}', space=vmem, size = 0x10000, scoped, tag = 'input window, operand 3, single buffered']
    #allocation6 [shape = 's32[1]{0}', space=sflag, size = 0x4, scoped, tag = 'scoped memory for tpu_custom_call.1']
    #allocation7 [shape = 'u8[512]{0}', space=vmem, size = 0x400, scoped, tag = 'output window, operand 0, single buffered']
    %9 = vsyncpa [#allocation3], 0
    %10 = vsyncpa [#allocation6], 0
    %11 = vsyncpa [#allocation4], 0
    // Predicated region
    $region2: #{tpu_custom_call.1} parent=1 // pred_check
      _
    $region3: #{tpu_custom_call.1} parent=1 // pred_check_branch
      %13 = sbr.rel (0) target = $region5
    $region4: #{tpu_custom_call.1} parent=1 // pred_region
      _
    $region5: #{tpu_custom_call.1} parent=1 // pred_fallthru
      _
    // Predicated region
    $region6: #{tpu_custom_call.1} parent=1 // pred_check
      _
    $region7: #{tpu_custom_call.1} parent=1 // pred_check_branch
      %15 = sbr.rel (0) target = $region9
    $region8: #{tpu_custom_call.1} parent=1 // pred_region
      %s17 = ssub.s32 256, 256
      %18 = vsyncadd [#allocation3], %s17
      %s19 = sshll.u32 [#allocation2], 4
      %s20 = int_to_ptr.vmem [resolvable:$true] %s19
      %25 = dma.hbm_to_vmem [thread:$0]  %s1, 256, %s20, [#allocation3], 128, 128, 8
    $region9: #{tpu_custom_call.1} parent=1 // pred_fallthru
      _
    // Predicated region
    $region10: #{tpu_custom_call.1} parent=1 // pred_check
      _
    $region11: #{tpu_custom_call.1} parent=1 // pred_check_branch
      %27 = sbr.rel (0) target = $region13
    $region12: #{tpu_custom_call.1} parent=1 // pred_region
      _
    $region13: #{tpu_custom_call.1} parent=1 // pred_fallthru
      _
    // Predicated region
    $region14: #{tpu_custom_call.1} parent=1 // pred_check
      _
    $region15: #{tpu_custom_call.1} parent=1 // pred_check_branch
      %29 = sbr.rel (0) target = $region17
    $region16: #{tpu_custom_call.1} parent=1 // pred_region
      %s31 = ssub.s32 2048, 2048
      %32 = vsyncadd [#allocation6], %s31
      %s33 = sshll.u32 [#allocation5], 4
      %s34 = int_to_ptr.vmem [resolvable:$true] %s33
      %39 = dma.hbm_to_vmem [thread:$0]  %s3, 2048, %s34, [#allocation6], 128, 128, 8
    $region17: #{tpu_custom_call.1} parent=1 // pred_fallthru
      _
    // Predicated region
    $region18: #{tpu_custom_call.1} parent=1 // pred_check
      _
    $region19: #{tpu_custom_call.1} parent=1 // pred_check_branch
      %41 = sbr.rel (0) target = $region21
    $region20: #{tpu_custom_call.1} parent=1 // pred_region
      %42 = dma.done [#allocation3], 256
    $region21: #{tpu_custom_call.1} parent=1 // pred_fallthru
      _
    // Predicated region
    $region22: #{tpu_custom_call.1} parent=1 // pred_check
      _
    $region23: #{tpu_custom_call.1} parent=1 // pred_check_branch
      %44 = sbr.rel (0) target = $region25
    $region24: #{tpu_custom_call.1} parent=1 // pred_region
      %45 = dma.done [#allocation6], 2048
    $region25: #{tpu_custom_call.1} parent=1 // pred_fallthru
      _
    %v47 = vld [vmem:[%s0] sm:$0xff]
    %v48 = vld [vmem:[%s0 + $0x8] sm:$0xff]
    %v49 = vld [vmem:[#allocation2] sm:$0xff]
    %v50 = vld [vmem:[#allocation2 + $0x8] sm:$0xff]
    %v51 = vsub.f32 %v47, %v49
    %v52 = vsub.f32 %v48, %v50
    %v53 = vpack.c.bf16 %v52, %v51
    %v54 = vld [vmem:[%s2] sm:$0xf]
    %v55 = vld [vmem:[%s2 + $0x4] sm:$0xf]
    %v56 = vld [vmem:[%s2 + $0x8] sm:$0xf]
    %v57 = vld [vmem:[%s2 + $0xc] sm:$0xf]
    %v62 = vunpack.c.l.b16 %v54
    %v63 = vunpack.c.l.b16 %v55
    %v64 = vunpack.c.l.b16 %v56
    %v65 = vunpack.c.l.b16 %v57
    %v66 = vpack.c.b16 %v63, %v62
    %v67 = vpack.c.b16 %v65, %v64
    %vm68 = vcmask 130048
    %v70 = vsel %vm68, %v66, 0
    %v73 = vsel %vm68, %v67, 0
    %75 = vmatprep.subr.bf16.mxu0 0
    %76 = vmatpush1.bf16.msra.mxu0 0
    %77 = vmatprep.subr.bf16.mxu0 0
    %78 = vmatpush1.bf16.msra.mxu0 0
    %79 = vmatprep.subr.bf16.mxu0 0
    %80 = vmatpush1.bf16.msra.mxu0 0
    %81 = vmatprep.subr.bf16.mxu0 0
    %82 = vmatpush1.bf16.msra.mxu0 0
    %83 = vmatprep.subr.bf16.mxu0 0
    %84 = vmatpush1.bf16.msra.mxu0 0
    %85 = vmatprep.subr.bf16.mxu0 0
    %86 = vmatpush1.bf16.msra.mxu0 0
    %87 = vmatprep.subr.bf16.mxu0 0
    %88 = vmatpush1.bf16.msra.mxu0 0
    %89 = vmatprep.subr.bf16.mxu0 0
    %90 = vmatpush1.bf16.msra.mxu0 %v53
    %91 = vmatprep.subr.bf16.mxu0 0
    %92 = vmatpush2.bf16.msra.mxu0 0
    %93 = vmatprep.subr.bf16.mxu0 0
    %94 = vmatpush2.bf16.msra.mxu0 0
    %95 = vmatprep.subr.bf16.mxu0 0
    %96 = vmatpush2.bf16.msra.mxu0 0
    %97 = vmatprep.subr.bf16.mxu0 0
    %98 = vmatpush2.bf16.msra.mxu0 0
    %99 = vmatprep.subr.bf16.mxu0 0
    %100 = vmatpush2.bf16.msra.mxu0 0
    %101 = vmatprep.subr.bf16.mxu0 0
    %102 = vmatpush2.bf16.msra.mxu0 0
    %103 = vmatprep.subr.bf16.mxu0 0
    %104 = vmatpush2.bf16.msra.mxu0 0
    %105 = vmatprep.subr.bf16.mxu0 0
    %106 = vmatpush2.bf16.msra.mxu0 0
    %107 = vmatprep.mubr.bf16.mxu0 0
    %108 = vmatmul.mubr.bf16.gmra.mxu0 %v70
    %v109 = vpop.f32.mrf.mxu0
    %v110 = vadd.f32 0.0, %v109
    %v111 = vpop.f32.mrf.mxu0
    %v112 = vpop.f32.mrf.mxu0
    %v113 = vadd.f32 0.0, %v112
    %v114 = vpop.f32.mrf.mxu0
    %115 = vmatprep.mubr.bf16.mxu0 0
    %116 = vmatmul.mubr.bf16.gmra.mxu0 %v73
    %v117 = vpop.f32.mrf.mxu0
    %v118 = vadd.f32 0.0, %v117
    %v119 = vpop.f32.mrf.mxu0
    %v120 = vpop.f32.mrf.mxu0
    %v121 = vadd.f32 0.0, %v120
    %v122 = vpop.f32.mrf.mxu0
    %123 = vdwg.mxu0
    %v124 = vpack.c.bf16 %v113, %v110
    %v125 = vpack.c.bf16 %v121, %v118
    %v126 = vld [vmem:[#allocation5] sm:$0xff]
    %v127 = vld [vmem:[#allocation5 + $0x8] sm:$0xff]
    %v128 = vld [vmem:[#allocation5 + $0x10] sm:$0xff]
    %v129 = vld [vmem:[#allocation5 + $0x18] sm:$0xff]
    %v130 = vld [vmem:[#allocation5 + $0x20] sm:$0xff]
    %v131 = vld [vmem:[#allocation5 + $0x28] sm:$0xff]
    %v132 = vld [vmem:[#allocation5 + $0x30] sm:$0xff]
    %v133 = vld [vmem:[#allocation5 + $0x38] sm:$0xff]
    %v134 = vld [vmem:[#allocation5 + $0x40] sm:$0xff]
    %v135 = vld [vmem:[#allocation5 + $0x48] sm:$0xff]
    %v136 = vld [vmem:[#allocation5 + $0x50] sm:$0xff]
    %v137 = vld [vmem:[#allocation5 + $0x58] sm:$0xff]
    %v138 = vld [vmem:[#allocation5 + $0x60] sm:$0xff]
    %v139 = vld [vmem:[#allocation5 + $0x68] sm:$0xff]
    %v140 = vld [vmem:[#allocation5 + $0x70] sm:$0xff]
    %v141 = vld [vmem:[#allocation5 + $0x78] sm:$0xff]
    %v158 = vunpack.c.l.b16 %v126
    %v159 = vunpack.c.h.b16 %v126
    %v160 = vunpack.c.l.b16 %v127
    %v161 = vunpack.c.h.b16 %v127
    %v162 = vunpack.c.l.b16 %v128
    %v163 = vunpack.c.h.b16 %v128
    %v164 = vunpack.c.l.b16 %v129
    %v165 = vunpack.c.h.b16 %v129
    %v166 = vunpack.c.l.b16 %v130
    %v167 = vunpack.c.h.b16 %v130
    %v168 = vunpack.c.l.b16 %v131
    %v169 = vunpack.c.h.b16 %v131
    %v170 = vunpack.c.l.b16 %v132
    %v171 = vunpack.c.h.b16 %v132
    %v172 = vunpack.c.l.b16 %v133
    %v173 = vunpack.c.h.b16 %v133
    %v174 = vunpack.c.l.b16 %v134
    %v175 = vunpack.c.h.b16 %v134
    %v176 = vunpack.c.l.b16 %v135
    %v177 = vunpack.c.h.b16 %v135
    %v178 = vunpack.c.l.b16 %v136
    %v179 = vunpack.c.h.b16 %v136
    %v180 = vunpack.c.l.b16 %v137
    %v181 = vunpack.c.h.b16 %v137
    %v182 = vunpack.c.l.b16 %v138
    %v183 = vunpack.c.h.b16 %v138
    %v184 = vunpack.c.l.b16 %v139
    %v185 = vunpack.c.h.b16 %v139
    %v186 = vunpack.c.l.b16 %v140
    %v187 = vunpack.c.h.b16 %v140
    %v188 = vunpack.c.l.b16 %v141
    %v189 = vunpack.c.h.b16 %v141
    %v190 = vpack.c.b16 %v160, %v158
    %v191 = vpack.c.b16 %v161, %v159
    %v192 = vpack.c.b16 %v164, %v162
    %v193 = vpack.c.b16 %v165, %v163
    %v194 = vpack.c.b16 %v168, %v166
    %v195 = vpack.c.b16 %v169, %v167
    %v196 = vpack.c.b16 %v172, %v170
    %v197 = vpack.c.b16 %v173, %v171
    %v198 = vpack.c.b16 %v176, %v174
    %v199 = vpack.c.b16 %v177, %v175
    %v200 = vpack.c.b16 %v180, %v178
    %v201 = vpack.c.b16 %v181, %v179
    %v202 = vpack.c.b16 %v184, %v182
    %v203 = vpack.c.b16 %v185, %v183
    %v204 = vpack.c.b16 %v188, %v186
    %v205 = vpack.c.b16 %v189, %v187
    %222 = vmatprep.subr.bf16.mxu0 %v205
    %223 = vmatpush1.bf16.msra.mxu0 %v204
    %224 = vmatprep.subr.bf16.mxu0 %v203
    %225 = vmatpush1.bf16.msra.mxu0 %v202
    %226 = vmatprep.subr.bf16.mxu0 %v201
    %227 = vmatpush1.bf16.msra.mxu0 %v200
    %228 = vmatprep.subr.bf16.mxu0 %v199
    %229 = vmatpush1.bf16.msra.mxu0 %v198
    %230 = vmatprep.subr.bf16.mxu0 %v197
    %231 = vmatpush1.bf16.msra.mxu0 %v196
    %232 = vmatprep.subr.bf16.mxu0 %v195
    %233 = vmatpush1.bf16.msra.mxu0 %v194
    %234 = vmatprep.subr.bf16.mxu0 %v193
    %235 = vmatpush1.bf16.msra.mxu0 %v192
    %236 = vmatprep.subr.bf16.mxu0 %v191
    %237 = vmatpush1.bf16.msra.mxu0 %v190
    %238 = vmatprep.subr.bf16.mxu0 0
    %239 = vmatpush2.bf16.msra.mxu0 0
    %240 = vmatprep.subr.bf16.mxu0 0
    %241 = vmatpush2.bf16.msra.mxu0 0
    %242 = vmatprep.subr.bf16.mxu0 0
    %243 = vmatpush2.bf16.msra.mxu0 0
    %244 = vmatprep.subr.bf16.mxu0 0
    %245 = vmatpush2.bf16.msra.mxu0 0
    %246 = vmatprep.subr.bf16.mxu0 0
    %247 = vmatpush2.bf16.msra.mxu0 0
    %248 = vmatprep.subr.bf16.mxu0 0
    %249 = vmatpush2.bf16.msra.mxu0 0
    %250 = vmatprep.subr.bf16.mxu0 0
    %251 = vmatpush2.bf16.msra.mxu0 0
    %252 = vmatprep.subr.bf16.mxu0 0
    %253 = vmatpush2.bf16.msra.mxu0 0
    %254 = vmatprep.mubr.bf16.mxu0 0
    %255 = vmatmul.mubr.bf16.gmra.mxu0 %v124
    %v256 = vpop.f32.mrf.mxu0
    %v257 = vadd.f32 0.0, %v256
    %v258 = vpop.f32.mrf.mxu0
    %v259 = vadd.f32 0.0, %v258
    %v260 = vpop.f32.mrf.mxu0
    %v261 = vadd.f32 0.0, %v260
    %v262 = vpop.f32.mrf.mxu0
    %v263 = vadd.f32 0.0, %v262
    %264 = vmatprep.mubr.bf16.mxu0 0
    %265 = vmatmul.mubr.bf16.gmra.mxu0 %v125
    %v266 = vpop.f32.mrf.mxu0
    %v267 = vadd.f32 0.0, %v266
    %v268 = vpop.f32.mrf.mxu0
    %v269 = vadd.f32 0.0, %v268
    %v270 = vpop.f32.mrf.mxu0
    %v271 = vadd.f32 0.0, %v270
    %v272 = vpop.f32.mrf.mxu0
    %v273 = vadd.f32 0.0, %v272
    %274 = vdwg.mxu0
    %v275 = vsub.f32 %v257, %v269
    %v276 = vsub.f32 %v261, %v273
    %v277 = vadd.f32 %v259, %v267
    %v278 = vadd.f32 %v263, %v271
    %v279 = vand.u32 2147483647, %v275
    %v280 = vand.u32 2147483647, %v276
    %v281 = vand.u32 2147483647, %v277
    %v282 = vand.u32 2147483647, %v278
    %v283 = vadd.f32 %v279, %v281
    %v284 = vadd.f32 %v280, %v282
    %v285 = vadd.f32 %v283, %v284
    %v286 = vrot.slane %v285, 4
    %v287 = vadd.f32 %v285, %v286
    %v288 = vrot.slane %v287, 2
    %v289 = vadd.f32 %v287, %v288
    %v290 = vrot.slane %v289, 1
    %v291 = vadd.f32 %v289, %v290
    %292 = vst [vmem:[#allocation7] sm:$0x1] %v291
    // Predicated region
    $region26: #{tpu_custom_call.1} parent=1 // pred_check
      _
    $region27: #{tpu_custom_call.1} parent=1 // pred_check_branch
      %294 = sbr.rel (0) target = $region29
    $region28: #{tpu_custom_call.1} parent=1 // pred_region
      %s296 = ssub.s32 16, 16
      %297 = vsyncadd [#allocation4], %s296
      %s299 = sshll.u32 [#allocation7], 4
      %s300 = int_to_ptr.vmem [resolvable:$true] %s299
      %302 = dma.vmem_to_hbm [thread:$0]  %s300, 16, %s4, [#allocation4]
    $region29: #{tpu_custom_call.1} parent=1 // pred_fallthru
      _
    // Predicated region
    $region30: #{tpu_custom_call.1} parent=1 // pred_check
      _
    $region31: #{tpu_custom_call.1} parent=1 // pred_check_branch
      %304 = sbr.rel (0) target = $region33
    $region32: #{tpu_custom_call.1} parent=1 // pred_region
      %305 = dma.done [#allocation4], 16
    $region33: #{tpu_custom_call.1} parent=1 // pred_fallthru
      _
    %306 = vsyncpa [#allocation3], 1
    %307 = vsyncpa [#allocation6], 1
    %308 = vsyncpa [#allocation4], 1

</llo_original>
